<compile_context>
chip_gen: v7x
topology: tpu7x:2x2x1
jax: 0.10.0
libtpu: 0.0.40
codegen_flags: <defaults>
</compile_context>

<pallas_src>
import jax
import jax.numpy as jnp
from jax.experimental import pallas as pl
from jax.experimental.pallas import tpu as pltpu

HIDDEN = 128
OUT_PAD = 128  # fc3 output padded to a full lane width


def dqn_kernel(x_ref, w1_ref, b1_ref, w2_ref, b2_ref, w3_ref, b3_ref, o_ref):
    # x: (TB, 3) f32, w1: (3, 128) f32, biases f32, w2/w3: bf16 (128,128).
    x = x_ref[...]
    w1 = w1_ref[...]

    # Layer 1 on the VPU: K=3 contraction as three broadcast mul-adds (f32).
    acc = x[:, 0:1] * w1[0:1, :]
    acc = acc + x[:, 1:2] * w1[1:2, :]
    acc = acc + x[:, 2:3] * w1[2:3, :]
    h1 = jnp.maximum(acc + b1_ref[...], 0.0)

    # Layer 2 on the MXU: bf16 inputs, f32 accumulation; bias/ReLU in f32.
    h2 = jnp.dot(h1.astype(jnp.bfloat16), w2_ref[...],
                 preferred_element_type=jnp.float32) + b2_ref[...]
    h2 = jnp.maximum(h2, 0.0)

    # Layer 3 on the MXU: output padded to 128 lanes -> unmasked stores.
    o_ref[...] = jnp.dot(h2.astype(jnp.bfloat16), w3_ref[...],
                         preferred_element_type=jnp.float32) + b3_ref[...]


def dqn_forward(x, w1, b1, w2, b2, w3, b3, *, tb=512):
    """y = fc3(relu(fc2(relu(fc1(x))))) with W_i stored as (in, out)."""
    B, in_dim = x.shape
    out_dim = w3.shape[1]

    # Batch tile: multiple of 16 (bf16 sublane pack), no larger than needed.
    tb = max(16, min(tb, ((B + 15) // 16) * 16))
    Bp = tb * pl.cdiv(B, tb)
    if Bp != B:
        x = jnp.zeros((Bp, in_dim), x.dtype).at[:B, :].set(x)

    # Pad fc3 to lane width with zeros; cast matmul weights to bf16.
    w3p = jnp.zeros((HIDDEN, OUT_PAD), jnp.float32).at[:, :out_dim].set(w3)
    b3p = jnp.zeros((1, OUT_PAD), jnp.float32).at[:, :out_dim].set(b3)
    w2b = w2.astype(jnp.bfloat16)
    w3b = w3p.astype(jnp.bfloat16)

    const = lambda arr: pl.BlockSpec(arr.shape, lambda i: (0,) * arr.ndim)

    out_padded = pl.pallas_call(
        dqn_kernel,
        out_shape=jax.ShapeDtypeStruct((Bp, OUT_PAD), jnp.float32),
        grid=(Bp // tb,),
        in_specs=[
            pl.BlockSpec((tb, in_dim), lambda i: (i, 0)),   # x tiles, pipelined
            const(w1), const(b1),                            # resident weights
            const(w2b), const(b2),
            const(w3b), const(b3p),
        ],
        out_specs=pl.BlockSpec((tb, OUT_PAD), lambda i: (i, 0)),
        compiler_params=pltpu.CompilerParams(
            dimension_semantics=("parallel",)),
    )(x, w1, b1, w2b, b2, w3b, b3p)

    return out_padded[:B, :out_dim]


def init_linear(key, fan_in, fan_out):
    # Deterministic init mimicking PyTorch nn.Linear default (+/- 1/sqrt(fan_in)).
    kw, kb = jax.random.split(key)
    bound = 1.0 / jnp.sqrt(jnp.float32(fan_in))
    # Stored as (in, out) so the kernel does x @ W (== PyTorch x @ W.T).
    w = jax.random.uniform(kw, (fan_in, fan_out), jnp.float32, -bound, bound)
    b = jax.random.uniform(kb, (1, fan_out), jnp.float32, -bound, bound)
    return w, b


if __name__ == "__main__":
    key = jax.random.PRNGKey(0)
    k_x, k1, k2, k3 = jax.random.split(key, 4)

    B = 8
    x = jax.random.normal(k_x, (B, 3), jnp.float32)

    w1, b1 = init_linear(k1, 3, HIDDEN)
    w2, b2 = init_linear(k2, HIDDEN, HIDDEN)
    w3, b3 = init_linear(k3, HIDDEN, 4)

    out = dqn_forward(x, w1, b1, w2, b2, w3, b3)
    out = jax.block_until_ready(out)

    # Pure-JAX reference mirroring the kernel's bf16 matmul / f32-accum math.
    ref_h1 = jnp.maximum(x @ w1 + b1, 0.0)
    ref_h2 = jnp.maximum(
        jnp.dot(ref_h1.astype(jnp.bfloat16), w2.astype(jnp.bfloat16),
                preferred_element_type=jnp.float32) + b2, 0.0)
    ref = jnp.dot(ref_h2.astype(jnp.bfloat16), w3.astype(jnp.bfloat16),
                  preferred_element_type=jnp.float32) + b3

    assert out.shape == (B, 4)
    assert jnp.allclose(out, ref, atol=1e-2, rtol=1e-2), (
        float(jnp.max(jnp.abs(out - ref))))

    print("KERNEL_OK")
</pallas_src>

<mosaic_0001>
module attributes {stable_mosaic.version = 11 : i64} {
  func.func @dqn_kernel(%arg0: i32, %arg1: memref<16x3xf32, #tpu.memory_space<vmem>>, %arg2: memref<3x128xf32, #tpu.memory_space<vmem>>, %arg3: memref<1x128xf32, #tpu.memory_space<vmem>>, %arg4: memref<128x128xbf16, #tpu.memory_space<vmem>>, %arg5: memref<1x128xf32, #tpu.memory_space<vmem>>, %arg6: memref<128x128xbf16, #tpu.memory_space<vmem>>, %arg7: memref<1x128xf32, #tpu.memory_space<vmem>>, %arg8: memref<16x128xf32, #tpu.memory_space<vmem>>) attributes {dimension_semantics = [#tpu.dimension_semantics<parallel>], iteration_bounds = array<i64: 1>, scalar_prefetch = 0 : i64, scratch_operands = 0 : i64, tpu.core_type = #tpu.core_type<tc>, window_params = [{transform_indices = @transform_0, window_bounds = array<i64: 16, 3>}, {pipeline_mode = #tpu.pipeline_mode<synchronous>, transform_indices = @transform_1, window_bounds = array<i64: 3, 128>}, {pipeline_mode = #tpu.pipeline_mode<synchronous>, transform_indices = @transform_2, window_bounds = array<i64: 1, 128>}, {pipeline_mode = #tpu.pipeline_mode<synchronous>, transform_indices = @transform_3, window_bounds = array<i64: 128, 128>}, {pipeline_mode = #tpu.pipeline_mode<synchronous>, transform_indices = @transform_4, window_bounds = array<i64: 1, 128>}, {pipeline_mode = #tpu.pipeline_mode<synchronous>, transform_indices = @transform_5, window_bounds = array<i64: 128, 128>}, {pipeline_mode = #tpu.pipeline_mode<synchronous>, transform_indices = @transform_6, window_bounds = array<i64: 1, 128>}, {transform_indices = @transform_7, window_bounds = array<i64: 16, 128>}]} {
    %c0 = arith.constant 0 : index
    %c0_0 = arith.constant 0 : index
    %0 = vector.load %arg1[%c0, %c0_0] : memref<16x3xf32, #tpu.memory_space<vmem>>, vector<16x3xf32>
    %c0_1 = arith.constant 0 : index
    %c0_2 = arith.constant 0 : index
    %1 = vector.load %arg2[%c0_1, %c0_2] : memref<3x128xf32, #tpu.memory_space<vmem>>, vector<3x128xf32>
    %2 = vector.extract_strided_slice %0 {offsets = [0, 0], sizes = [16, 1], strides = [1, 1]} : vector<16x3xf32> to vector<16x1xf32>
    %3 = vector.extract_strided_slice %1 {offsets = [0, 0], sizes = [1, 128], strides = [1, 1]} : vector<3x128xf32> to vector<1x128xf32>
    %4 = vector.broadcast %2 : vector<16x1xf32> to vector<16x128xf32>
    %5 = vector.broadcast %3 : vector<1x128xf32> to vector<16x128xf32>
    %6 = arith.mulf %4, %5 : vector<16x128xf32>
    %7 = vector.extract_strided_slice %0 {offsets = [0, 1], sizes = [16, 1], strides = [1, 1]} : vector<16x3xf32> to vector<16x1xf32>
    %8 = vector.extract_strided_slice %1 {offsets = [1, 0], sizes = [1, 128], strides = [1, 1]} : vector<3x128xf32> to vector<1x128xf32>
    %9 = vector.broadcast %7 : vector<16x1xf32> to vector<16x128xf32>
    %10 = vector.broadcast %8 : vector<1x128xf32> to vector<16x128xf32>
    %11 = arith.mulf %9, %10 : vector<16x128xf32>
    %12 = arith.addf %6, %11 : vector<16x128xf32>
    %13 = vector.extract_strided_slice %0 {offsets = [0, 2], sizes = [16, 1], strides = [1, 1]} : vector<16x3xf32> to vector<16x1xf32>
    %14 = vector.extract_strided_slice %1 {offsets = [2, 0], sizes = [1, 128], strides = [1, 1]} : vector<3x128xf32> to vector<1x128xf32>
    %15 = vector.broadcast %13 : vector<16x1xf32> to vector<16x128xf32>
    %16 = vector.broadcast %14 : vector<1x128xf32> to vector<16x128xf32>
    %17 = arith.mulf %15, %16 : vector<16x128xf32>
    %18 = arith.addf %12, %17 : vector<16x128xf32>
    %c0_3 = arith.constant 0 : index
    %c0_4 = arith.constant 0 : index
    %19 = vector.load %arg3[%c0_3, %c0_4] : memref<1x128xf32, #tpu.memory_space<vmem>>, vector<1x128xf32>
    %20 = vector.broadcast %19 : vector<1x128xf32> to vector<16x128xf32>
    %21 = arith.addf %18, %20 : vector<16x128xf32>
    %cst = arith.constant 0.000000e+00 : f32
    %22 = vector.broadcast %cst : f32 to vector<16x128xf32>
    %23 = arith.maximumf %21, %22 : vector<16x128xf32>
    %24 = arith.truncf %23 : vector<16x128xf32> to vector<16x128xbf16>
    %c0_5 = arith.constant 0 : index
    %c0_6 = arith.constant 0 : index
    %25 = vector.load %arg4[%c0_5, %c0_6] : memref<128x128xbf16, #tpu.memory_space<vmem>>, vector<128x128xbf16>
    %cst_7 = arith.constant dense<0.000000e+00> : vector<16x128xf32>
    %26 = tpu.matmul %24, %25, %cst_7 {dimension_numbers = #tpu.dot_dimension_numbers<[1], [0], [0], [1], [0, 0, 1, 1], [], []>} : vector<16x128xbf16>, vector<128x128xbf16>, vector<16x128xf32> -> vector<16x128xf32>
    %c0_8 = arith.constant 0 : index
    %c0_9 = arith.constant 0 : index
    %27 = vector.load %arg5[%c0_8, %c0_9] : memref<1x128xf32, #tpu.memory_space<vmem>>, vector<1x128xf32>
    %28 = vector.broadcast %27 : vector<1x128xf32> to vector<16x128xf32>
    %29 = arith.addf %26, %28 : vector<16x128xf32>
    %cst_10 = arith.constant 0.000000e+00 : f32
    %30 = vector.broadcast %cst_10 : f32 to vector<16x128xf32>
    %31 = arith.maximumf %29, %30 : vector<16x128xf32>
    %32 = arith.truncf %31 : vector<16x128xf32> to vector<16x128xbf16>
    %c0_11 = arith.constant 0 : index
    %c0_12 = arith.constant 0 : index
    %33 = vector.load %arg6[%c0_11, %c0_12] : memref<128x128xbf16, #tpu.memory_space<vmem>>, vector<128x128xbf16>
    %cst_13 = arith.constant dense<0.000000e+00> : vector<16x128xf32>
    %34 = tpu.matmul %32, %33, %cst_13 {dimension_numbers = #tpu.dot_dimension_numbers<[1], [0], [0], [1], [0, 0, 1, 1], [], []>} : vector<16x128xbf16>, vector<128x128xbf16>, vector<16x128xf32> -> vector<16x128xf32>
    %c0_14 = arith.constant 0 : index
    %c0_15 = arith.constant 0 : index
    %35 = vector.load %arg7[%c0_14, %c0_15] : memref<1x128xf32, #tpu.memory_space<vmem>>, vector<1x128xf32>
    %36 = vector.broadcast %35 : vector<1x128xf32> to vector<16x128xf32>
    %37 = arith.addf %34, %36 : vector<16x128xf32>
    %c0_16 = arith.constant 0 : index
    %c0_17 = arith.constant 0 : index
    %38 = vector.load %arg8[%c0_16, %c0_17] : memref<16x128xf32, #tpu.memory_space<vmem>>, vector<16x128xf32>
    tpu.vector_store %arg8[%c0_16, %c0_17], %37 {strides = array<i32>} : memref<16x128xf32, #tpu.memory_space<vmem>>, vector<16x128xf32>,
    return
  }
  func.func @transform_0(%arg0: i32) -> (i32, i32) {
    %c0_i32 = arith.constant 0 : i32
    %c0_i32_0 = arith.constant 0 : i32
    return %arg0, %c0_i32 : i32, i32
  }
  func.func @transform_1(%arg0: i32) -> (i32, i32) {
    %c0_i32 = arith.constant 0 : i32
    %c0_i32_0 = arith.constant 0 : i32
    %c0_i32_1 = arith.constant 0 : i32
    return %c0_i32, %c0_i32_0 : i32, i32
  }
  func.func @transform_2(%arg0: i32) -> (i32, i32) {
    %c0_i32 = arith.constant 0 : i32
    %c0_i32_0 = arith.constant 0 : i32
    %c0_i32_1 = arith.constant 0 : i32
    return %c0_i32, %c0_i32_0 : i32, i32
  }
  func.func @transform_3(%arg0: i32) -> (i32, i32) {
    %c0_i32 = arith.constant 0 : i32
    %c0_i32_0 = arith.constant 0 : i32
    %c0_i32_1 = arith.constant 0 : i32
    return %c0_i32, %c0_i32_0 : i32, i32
  }
  func.func @transform_4(%arg0: i32) -> (i32, i32) {
    %c0_i32 = arith.constant 0 : i32
    %c0_i32_0 = arith.constant 0 : i32
    %c0_i32_1 = arith.constant 0 : i32
    return %c0_i32, %c0_i32_0 : i32, i32
  }
  func.func @transform_5(%arg0: i32) -> (i32, i32) {
    %c0_i32 = arith.constant 0 : i32
    %c0_i32_0 = arith.constant 0 : i32
    %c0_i32_1 = arith.constant 0 : i32
    return %c0_i32, %c0_i32_0 : i32, i32
  }
  func.func @transform_6(%arg0: i32) -> (i32, i32) {
    %c0_i32 = arith.constant 0 : i32
    %c0_i32_0 = arith.constant 0 : i32
    %c0_i32_1 = arith.constant 0 : i32
    return %c0_i32, %c0_i32_0 : i32, i32
  }
  func.func @transform_7(%arg0: i32) -> (i32, i32) {
    %c0_i32 = arith.constant 0 : i32
    %c0_i32_0 = arith.constant 0 : i32
    return %arg0, %c0_i32 : i32, i32
  }
}

</mosaic_0001>

<llo_original>
// kernel: tpu_custom_call.1
$region0: #{tpu_custom_call.1}
  #allocation0 [shape = 'u32[]', space=smem, size = 0x4, offset = 0x4, fixed_abs, tag = 'smem constant byte address 0x4 - core index']
  #allocation1 [shape = 'u32[144,128]{1,0:T(1,128)}', space=vmem, size = 0x12000, scoped, tag = 'internal scratch']
  %s0 = inlined_call_operand.vmem [shape: f32[16,3], index: 0, kind: input, shape index: {}]
  %s1 = inlined_call_operand.vmem [shape: f32[3,128], index: 1, kind: input, shape index: {}]
  %s2 = inlined_call_operand.vmem [shape: f32[1,128], index: 2, kind: input, shape index: {}]
  %s3 = inlined_call_operand.hbm [shape: bf16[128,128], index: 3, kind: input, shape index: {}]
  %s4 = inlined_call_operand.vmem [shape: f32[1,128], index: 4, kind: input, shape index: {}]
  %s5 = inlined_call_operand.hbm [shape: bf16[128,128], index: 5, kind: input, shape index: {}]
  %s6 = inlined_call_operand.vmem [shape: f32[1,128], index: 6, kind: input, shape index: {}]
  %s7 = inlined_call_operand.hbm [shape: f32[16,128], index: 7, kind: output, shape index: {}]
  %s8 = sld [smem:[#allocation0]]
  $region46: #{tpu_custom_call.1} parent=0
    _
  %s10 = ssub.s32 1, %s8
  %s11 = scalar_select 0, %s10, %s8
  $region1: #{tpu_custom_call.1} parent=0
    #allocation2 [shape = 'u8[32768]{0}', space=vmem, size = 0x8000, scoped, tag = 'input window, operand 3, single buffered']
    #allocation3 [shape = 's32[1]{0}', space=sflag, size = 0x4, scoped, tag = 'scoped memory for tpu_custom_call.1']
    #allocation4 [shape = 's32[1]{0}', space=sflag, size = 0x4, scoped, tag = 'scoped memory for tpu_custom_call.1']
    #allocation5 [shape = 'u8[32768]{0}', space=vmem, size = 0x8000, scoped, tag = 'input window, operand 5, single buffered']
    #allocation6 [shape = 's32[1]{0}', space=sflag, size = 0x4, scoped, tag = 'scoped memory for tpu_custom_call.1']
    #allocation7 [shape = 'u8[8192]{0}', space=vmem, size = 0x2000, scoped, tag = 'output window, operand 0, single buffered']
    %12 = vsyncpa [#allocation3], 0
    %13 = vsyncpa [#allocation6], 0
    %14 = vsyncpa [#allocation4], 0
    // Predicated region
    $region2: #{tpu_custom_call.1} parent=1 // pred_check
      _
    $region3: #{tpu_custom_call.1} parent=1 // pred_check_branch
      %16 = sbr.rel (0) target = $region5
    $region4: #{tpu_custom_call.1} parent=1 // pred_region
      _
    $region5: #{tpu_custom_call.1} parent=1 // pred_fallthru
      _
    // Predicated region
    $region6: #{tpu_custom_call.1} parent=1 // pred_check
      _
    $region7: #{tpu_custom_call.1} parent=1 // pred_check_branch
      %18 = sbr.rel (0) target = $region9
    $region8: #{tpu_custom_call.1} parent=1 // pred_region
      _
    $region9: #{tpu_custom_call.1} parent=1 // pred_fallthru
      _
    // Predicated region
    $region10: #{tpu_custom_call.1} parent=1 // pred_check
      _
    $region11: #{tpu_custom_call.1} parent=1 // pred_check_branch
      %20 = sbr.rel (0) target = $region13
    $region12: #{tpu_custom_call.1} parent=1 // pred_region
      _
    $region13: #{tpu_custom_call.1} parent=1 // pred_fallthru
      _
    // Predicated region
    $region14: #{tpu_custom_call.1} parent=1 // pred_check
      _
    $region15: #{tpu_custom_call.1} parent=1 // pred_check_branch
      %22 = sbr.rel (0) target = $region17
    $region16: #{tpu_custom_call.1} parent=1 // pred_region
      %s24 = ssub.s32 1024, 1024
      %25 = vsyncadd [#allocation3], %s24
      %s26 = sshll.u32 [#allocation2], 4
      %s27 = int_to_ptr.vmem [resolvable:$true] %s26
      %32 = dma.hbm_to_vmem [thread:$0]  %s3, 1024, %s27, [#allocation3], 64, 64, 4
    $region17: #{tpu_custom_call.1} parent=1 // pred_fallthru
      _
    // Predicated region
    $region18: #{tpu_custom_call.1} parent=1 // pred_check
      _
    $region19: #{tpu_custom_call.1} parent=1 // pred_check_branch
      %34 = sbr.rel (0) target = $region21
    $region20: #{tpu_custom_call.1} parent=1 // pred_region
      _
    $region21: #{tpu_custom_call.1} parent=1 // pred_fallthru
      _
    // Predicated region
    $region22: #{tpu_custom_call.1} parent=1 // pred_check
      _
    $region23: #{tpu_custom_call.1} parent=1 // pred_check_branch
      %36 = sbr.rel (0) target = $region25
    $region24: #{tpu_custom_call.1} parent=1 // pred_region
      %s38 = ssub.s32 1024, 1024
      %39 = vsyncadd [#allocation6], %s38
      %s40 = sshll.u32 [#allocation5], 4
      %s41 = int_to_ptr.vmem [resolvable:$true] %s40
      %46 = dma.hbm_to_vmem [thread:$0]  %s5, 1024, %s41, [#allocation6], 64, 64, 4
    $region25: #{tpu_custom_call.1} parent=1 // pred_fallthru
      _
    // Predicated region
    $region26: #{tpu_custom_call.1} parent=1 // pred_check
      _
    $region27: #{tpu_custom_call.1} parent=1 // pred_check_branch
      %48 = sbr.rel (0) target = $region29
    $region28: #{tpu_custom_call.1} parent=1 // pred_region
      _
    $region29: #{tpu_custom_call.1} parent=1 // pred_fallthru
      _
    // Predicated region
    $region30: #{tpu_custom_call.1} parent=1 // pred_check
      _
    $region31: #{tpu_custom_call.1} parent=1 // pred_check_branch
      %50 = sbr.rel (0) target = $region33
    $region32: #{tpu_custom_call.1} parent=1 // pred_region
      %51 = dma.done [#allocation3], 1024
    $region33: #{tpu_custom_call.1} parent=1 // pred_fallthru
      _
    // Predicated region
    $region34: #{tpu_custom_call.1} parent=1 // pred_check
      _
    $region35: #{tpu_custom_call.1} parent=1 // pred_check_branch
      %53 = sbr.rel (0) target = $region37
    $region36: #{tpu_custom_call.1} parent=1 // pred_region
      %54 = dma.done [#allocation6], 1024
    $region37: #{tpu_custom_call.1} parent=1 // pred_fallthru
      _
    %v56 = vld [vmem:[%s0] sm:$0xff]
    %v57 = vld [vmem:[%s0 + $0x8] sm:$0xff]
    %v58 = vld [vmem:[%s1] sm:$0x7]
    %60 = vset.pattern.permute.xlu0 0
    %61 = vperm.xlu0 %60, %v56
    %v62 = vpop.permute.xlu0 %61
    %65 = vset.pattern.permute.xlu0 0
    %66 = vperm.xlu0 %65, %v57
    %v67 = vpop.permute.xlu0 %66
    %v69 = vlaneseq
    %v70 = vshrl.u32 %v69, 7
    %v71 = vsub.s32 0, %v70
    %v72 = vrot.slane %v58, %v71
    %v73 = vmul.f32 %v62, %v72
    %v74 = vmul.f32 %v67, %v72
    %75 = vset.pattern.permute.xlu0 1
    %76 = vperm.xlu0 %75, %v56
    %v77 = vpop.permute.xlu0 %76
    %79 = vset.pattern.permute.xlu0 1
    %80 = vperm.xlu0 %79, %v57
    %v81 = vpop.permute.xlu0 %80
    %v83 = vlaneseq
    %v84 = vshrl.u32 %v83, 7
    %v85 = vsub.s32 1, %v84
    %v86 = vrot.slane %v58, %v85
    %v87 = vmul.f32 %v77, %v86
    %v88 = vmul.f32 %v81, %v86
    %v89 = vadd.f32 %v73, %v87
    %v90 = vadd.f32 %v74, %v88
    %91 = vset.pattern.permute.xlu0 2
    %92 = vperm.xlu0 %91, %v56
    %v93 = vpop.permute.xlu0 %92
    %95 = vset.pattern.permute.xlu0 2
    %96 = vperm.xlu0 %95, %v57
    %v97 = vpop.permute.xlu0 %96
    %v99 = vlaneseq
    %v100 = vshrl.u32 %v99, 7
    %v101 = vsub.s32 2, %v100
    %v102 = vrot.slane %v58, %v101
    %v103 = vmul.f32 %v93, %v102
    %v104 = vmul.f32 %v97, %v102
    %v105 = vadd.f32 %v89, %v103
    %v106 = vadd.f32 %v90, %v104
    %v107 = vld [vmem:[%s2] sm:$0x1]
    %v109 = vlaneseq
    %v110 = vshrl.u32 %v109, 7
    %v111 = vsub.s32 0, %v110
    %v112 = vrot.slane %v107, %v111
    %v114 = vadd.f32 %v105, %v112
    %v115 = vadd.f32 %v106, %v112
    %v116 = vmax.f32 %v114, 0.0
    %v117 = vmax.f32 %v115, 0.0
    %v118 = vpack.c.bf16 %v117, %v116
    %v119 = vld [vmem:[#allocation2] sm:$0xf]
    %v120 = vld [vmem:[#allocation2 + $0x4] sm:$0xf]
    %v121 = vld [vmem:[#allocation2 + $0x8] sm:$0xf]
    %v122 = vld [vmem:[#allocation2 + $0xc] sm:$0xf]
    %v123 = vld [vmem:[#allocation2 + $0x10] sm:$0xf]
    %v124 = vld [vmem:[#allocation2 + $0x14] sm:$0xf]
    %v125 = vld [vmem:[#allocation2 + $0x18] sm:$0xf]
    %v126 = vld [vmem:[#allocation2 + $0x1c] sm:$0xf]
    %v127 = vld [vmem:[#allocation2 + $0x20] sm:$0xf]
    %v128 = vld [vmem:[#allocation2 + $0x24] sm:$0xf]
    %v129 = vld [vmem:[#allocation2 + $0x28] sm:$0xf]
    %v130 = vld [vmem:[#allocation2 + $0x2c] sm:$0xf]
    %v131 = vld [vmem:[#allocation2 + $0x30] sm:$0xf]
    %v132 = vld [vmem:[#allocation2 + $0x34] sm:$0xf]
    %v133 = vld [vmem:[#allocation2 + $0x38] sm:$0xf]
    %v134 = vld [vmem:[#allocation2 + $0x3c] sm:$0xf]
    %v135 = vld [vmem:[%s4] sm:$0x1]
    %v137 = vlaneseq
    %v138 = vshrl.u32 %v137, 7
    %v139 = vsub.s32 0, %v138
    %v140 = vrot.slane %v135, %v139
    %v158 = vunpack.c.l.b16 %v119
    %v159 = vunpack.c.l.b16 %v120
    %v160 = vunpack.c.l.b16 %v121
    %v161 = vunpack.c.l.b16 %v122
    %v162 = vunpack.c.l.b16 %v123
    %v163 = vunpack.c.l.b16 %v124
    %v164 = vunpack.c.l.b16 %v125
    %v165 = vunpack.c.l.b16 %v126
    %v166 = vunpack.c.l.b16 %v127
    %v167 = vunpack.c.l.b16 %v128
    %v168 = vunpack.c.l.b16 %v129
    %v169 = vunpack.c.l.b16 %v130
    %v170 = vunpack.c.l.b16 %v131
    %v171 = vunpack.c.l.b16 %v132
    %v172 = vunpack.c.l.b16 %v133
    %v173 = vunpack.c.l.b16 %v134
    %v174 = vpack.c.b16 %v159, %v158
    %v175 = vpack.c.b16 %v161, %v160
    %v176 = vpack.c.b16 %v163, %v162
    %v177 = vpack.c.b16 %v165, %v164
    %v178 = vpack.c.b16 %v167, %v166
    %v179 = vpack.c.b16 %v169, %v168
    %v180 = vpack.c.b16 %v171, %v170
    %v181 = vpack.c.b16 %v173, %v172
    %190 = vmatprep.subr.bf16.mxu0 0
    %191 = vmatpush1.bf16.msra.mxu0 %v174
    %192 = vmatprep.subr.bf16.mxu0 0
    %193 = vmatpush1.bf16.msra.mxu0 %v175
    %194 = vmatprep.subr.bf16.mxu0 0
    %195 = vmatpush1.bf16.msra.mxu0 %v176
    %196 = vmatprep.subr.bf16.mxu0 0
    %197 = vmatpush1.bf16.msra.mxu0 %v177
    %198 = vmatprep.subr.bf16.mxu0 0
    %199 = vmatpush1.bf16.msra.mxu0 %v178
    %200 = vmatprep.subr.bf16.mxu0 0
    %201 = vmatpush1.bf16.msra.mxu0 %v179
    %202 = vmatprep.subr.bf16.mxu0 0
    %203 = vmatpush1.bf16.msra.mxu0 %v180
    %204 = vmatprep.subr.bf16.mxu0 0
    %205 = vmatpush1.bf16.msra.mxu0 %v181
    %206 = vmatprep.subr.bf16.mxu0 0
    %207 = vmatpush1.bf16.msra.mxu0 0
    %208 = vmatprep.subr.bf16.mxu0 0
    %209 = vmatpush1.bf16.msra.mxu0 0
    %210 = vmatprep.subr.bf16.mxu0 0
    %211 = vmatpush1.bf16.msra.mxu0 0
    %212 = vmatprep.subr.bf16.mxu0 0
    %213 = vmatpush1.bf16.msra.mxu0 0
    %214 = vmatprep.subr.bf16.mxu0 0
    %215 = vmatpush1.bf16.msra.mxu0 0
    %216 = vmatprep.subr.bf16.mxu0 0
    %217 = vmatpush1.bf16.msra.mxu0 0
    %218 = vmatprep.subr.bf16.mxu0 0
    %219 = vmatpush1.bf16.msra.mxu0 0
    %220 = vmatprep.subr.bf16.mxu0 0
    %221 = vmatpush1.bf16.msra.mxu0 0
    %222 = vmatprep.mubr.bf16.mxu0 0
    %223 = vmatmul.mubr.bf16.gmra.mrb[0].mxu0 %v118
    %v224 = vpop.f32.mrb[0].mxu0
    %v225 = vadd.f32 %v140, %v224
    %v226 = vpop.f32.mrb[0].mxu0
    %v227 = vpop.f32.mrb[0].mxu0
    %v228 = vadd.f32 %v140, %v227
    %v229 = vpop.f32.mrb[0].mxu0
    %230 = vdwg.mxu0
    %v231 = vmax.f32 %v225, 0.0
    %v232 = vmax.f32 %v228, 0.0
    %v233 = vpack.c.bf16 %v232, %v231
    %v234 = vld [vmem:[#allocation5] sm:$0xf]
    %v235 = vld [vmem:[#allocation5 + $0x4] sm:$0xf]
    %v236 = vld [vmem:[#allocation5 + $0x8] sm:$0xf]
    %v237 = vld [vmem:[#allocation5 + $0xc] sm:$0xf]
    %v238 = vld [vmem:[#allocation5 + $0x10] sm:$0xf]
    %v239 = vld [vmem:[#allocation5 + $0x14] sm:$0xf]
    %v240 = vld [vmem:[#allocation5 + $0x18] sm:$0xf]
    %v241 = vld [vmem:[#allocation5 + $0x1c] sm:$0xf]
    %v242 = vld [vmem:[#allocation5 + $0x20] sm:$0xf]
    %v243 = vld [vmem:[#allocation5 + $0x24] sm:$0xf]
    %v244 = vld [vmem:[#allocation5 + $0x28] sm:$0xf]
    %v245 = vld [vmem:[#allocation5 + $0x2c] sm:$0xf]
    %v246 = vld [vmem:[#allocation5 + $0x30] sm:$0xf]
    %v247 = vld [vmem:[#allocation5 + $0x34] sm:$0xf]
    %v248 = vld [vmem:[#allocation5 + $0x38] sm:$0xf]
    %v249 = vld [vmem:[#allocation5 + $0x3c] sm:$0xf]
    %v250 = vld [vmem:[%s6] sm:$0x1]
    %v252 = vlaneseq
    %v253 = vshrl.u32 %v252, 7
    %v254 = vsub.s32 0, %v253
    %v255 = vrot.slane %v250, %v254
    %v273 = vunpack.c.l.b16 %v234
    %v274 = vunpack.c.l.b16 %v235
    %v275 = vunpack.c.l.b16 %v236
    %v276 = vunpack.c.l.b16 %v237
    %v277 = vunpack.c.l.b16 %v238
    %v278 = vunpack.c.l.b16 %v239
    %v279 = vunpack.c.l.b16 %v240
    %v280 = vunpack.c.l.b16 %v241
    %v281 = vunpack.c.l.b16 %v242
    %v282 = vunpack.c.l.b16 %v243
    %v283 = vunpack.c.l.b16 %v244
    %v284 = vunpack.c.l.b16 %v245
    %v285 = vunpack.c.l.b16 %v246
    %v286 = vunpack.c.l.b16 %v247
    %v287 = vunpack.c.l.b16 %v248
    %v288 = vunpack.c.l.b16 %v249
    %v289 = vpack.c.b16 %v274, %v273
    %v290 = vpack.c.b16 %v276, %v275
    %v291 = vpack.c.b16 %v278, %v277
    %v292 = vpack.c.b16 %v280, %v279
    %v293 = vpack.c.b16 %v282, %v281
    %v294 = vpack.c.b16 %v284, %v283
    %v295 = vpack.c.b16 %v286, %v285
    %v296 = vpack.c.b16 %v288, %v287
    %305 = vmatprep.subr.bf16.mxu0 0
    %306 = vmatpush1.bf16.msra.mxu0 %v289
    %307 = vmatprep.subr.bf16.mxu0 0
    %308 = vmatpush1.bf16.msra.mxu0 %v290
    %309 = vmatprep.subr.bf16.mxu0 0
    %310 = vmatpush1.bf16.msra.mxu0 %v291
    %311 = vmatprep.subr.bf16.mxu0 0
    %312 = vmatpush1.bf16.msra.mxu0 %v292
    %313 = vmatprep.subr.bf16.mxu0 0
    %314 = vmatpush1.bf16.msra.mxu0 %v293
    %315 = vmatprep.subr.bf16.mxu0 0
    %316 = vmatpush1.bf16.msra.mxu0 %v294
    %317 = vmatprep.subr.bf16.mxu0 0
    %318 = vmatpush1.bf16.msra.mxu0 %v295
    %319 = vmatprep.subr.bf16.mxu0 0
    %320 = vmatpush1.bf16.msra.mxu0 %v296
    %321 = vmatprep.subr.bf16.mxu0 0
    %322 = vmatpush1.bf16.msra.mxu0 0
    %323 = vmatprep.subr.bf16.mxu0 0
    %324 = vmatpush1.bf16.msra.mxu0 0
    %325 = vmatprep.subr.bf16.mxu0 0
    %326 = vmatpush1.bf16.msra.mxu0 0
    %327 = vmatprep.subr.bf16.mxu0 0
    %328 = vmatpush1.bf16.msra.mxu0 0
    %329 = vmatprep.subr.bf16.mxu0 0
    %330 = vmatpush1.bf16.msra.mxu0 0
    %331 = vmatprep.subr.bf16.mxu0 0
    %332 = vmatpush1.bf16.msra.mxu0 0
    %333 = vmatprep.subr.bf16.mxu0 0
    %334 = vmatpush1.bf16.msra.mxu0 0
    %335 = vmatprep.subr.bf16.mxu0 0
    %336 = vmatpush1.bf16.msra.mxu0 0
    %337 = vmatprep.mubr.bf16.mxu0 0
    %338 = vmatmul.mubr.bf16.gmra.mrb[0].mxu0 %v233
    %v339 = vpop.f32.mrb[0].mxu0
    %v340 = vadd.f32 %v255, %v339
    %v341 = vpop.f32.mrb[0].mxu0
    %v342 = vpop.f32.mrb[0].mxu0
    %v343 = vadd.f32 %v255, %v342
    %v344 = vpop.f32.mrb[0].mxu0
    %345 = vdwg.mxu0
    %346 = vst [vmem:[#allocation7] sm:$0xff] %v340
    %347 = vst [vmem:[#allocation7 + $0x8] sm:$0xff] %v343
    // Predicated region
    $region38: #{tpu_custom_call.1} parent=1 // pred_check
      _
    $region39: #{tpu_custom_call.1} parent=1 // pred_check_branch
      %349 = sbr.rel (0) target = $region41
    $region40: #{tpu_custom_call.1} parent=1 // pred_region
      %s351 = ssub.s32 256, 256
      %352 = vsyncadd [#allocation4], %s351
      %s353 = sshll.u32 [#allocation7], 4
      %s354 = int_to_ptr.vmem [resolvable:$true] %s353
      %359 = dma.vmem_to_hbm [thread:$0]  %s354, 256, %s7, [#allocation4], 128, 128, 8
    $region41: #{tpu_custom_call.1} parent=1 // pred_fallthru
      _
    // Predicated region
    $region42: #{tpu_custom_call.1} parent=1 // pred_check
      _
    $region43: #{tpu_custom_call.1} parent=1 // pred_check_branch
      %361 = sbr.rel (0) target = $region45
    $region44: #{tpu_custom_call.1} parent=1 // pred_region
      %362 = dma.done [#allocation4], 256
    $region45: #{tpu_custom_call.1} parent=1 // pred_fallthru
      _
    %363 = vsyncpa [#allocation3], 1
    %364 = vsyncpa [#allocation6], 1
    %365 = vsyncpa [#allocation4], 1

</llo_original>
